<compile_context>
chip_gen: v7x
topology: tpu7x:2x2x1
jax: 0.10.0
libtpu: 0.0.40
codegen_flags: <defaults>
</compile_context>

<pallas_src>
import functools

import jax
import jax.numpy as jnp
from jax import lax
from jax.experimental import pallas as pl
from jax.experimental.pallas import tpu as pltpu


# ---------------------------------------------------------------------------
# Dense path: voxels laid out as (rows, 128) so every vreg is fully dense.
# ---------------------------------------------------------------------------
def _dense_loss_kernel(x_ref, lbl_ref, w_ref, out_ref, *,
                       n_classes, block_r, rows_total, n_tiles,
                       tiles_per_core, needs_row_mask, padded_tiles):
    ti = pl.program_id(2)
    gt = pl.program_id(0) * tiles_per_core + ti          # global row-tile index

    @pl.when(ti == 0)
    def _init():
        out_ref[...] = jnp.zeros_like(out_ref)

    def accumulate(mask_tail):
        lbl = lbl_ref[0]                                  # (TR, 128) int32
        if mask_tail:
            row = lax.broadcasted_iota(jnp.int32, lbl.shape, 0)
            valid = (gt * block_r + row) < rows_total
            validf = valid.astype(jnp.float32)
            lbl = jnp.where(valid, lbl, 0)

        # Unrolled class loop on dense (TR, 128) slabs (native dtype cast here).
        xs = []
        for c in range(n_classes):
            xc = x_ref[c].astype(jnp.float32)
            if mask_tail:
                xc = jnp.where(valid, xc, 0.0)            # kill OOB garbage/NaN
            xs.append(xc)

        m = xs[0]
        for c in range(1, n_classes):
            m = jnp.maximum(m, xs[c])

        e0 = jnp.exp(xs[0] - m)                           # background exp
        denom = e0
        x_at = xs[0]
        e_at = e0
        w_vox = jnp.full_like(m, w_ref[0])                # class-0 weight
        for c in range(1, n_classes):
            e = jnp.exp(xs[c] - m)
            denom = denom + e
            sel = lbl == c
            x_at = jnp.where(sel, xs[c], x_at)
            e_at = jnp.where(sel, e, e_at)
            w_vox = jnp.where(sel, w_ref[c], w_vox)

        inv = 1.0 / denom                                 # exact (1e-4 tol)
        p_at = e_at * inv                                 # softmax prob @ label
        p0 = e0 * inv                                     # background prob
        ce_vox = jnp.log(denom) + (m - x_at)              # -log_softmax[label]
        fg = (lbl != 0).astype(jnp.float32)

        psum_v = 1.0 - p0                                 # sum_{c>=1} softmax
        if mask_tail:
            psum_v = psum_v * validf
            w_vox = w_vox * validf

        quantities = (p_at * fg,                          # dice intersection
                      psum_v,                             # dice pred sum
                      fg,                                 # dice target sum
                      w_vox * ce_vox,                     # weighted CE numerator
                      w_vox)                              # weighted CE denom
        for qi, q in enumerate(quantities):
            if block_r % 8 == 0:
                part = q.reshape(block_r // 8, 8, 128).sum(axis=0)   # (8,128)
                out_ref[qi * 8:(qi + 1) * 8, :] += part
            else:  # tiny single full-dim tile (rows < 8)
                out_ref[qi * 8:qi * 8 + 1, :] += jnp.sum(q, axis=0, keepdims=True)

    last = n_tiles - 1
    in_range = (gt < n_tiles) if padded_tiles else None   # skip padded core tiles

    if needs_row_mask:
        main_c = (gt != last) if in_range is None else jnp.logical_and(in_range, gt != last)
        tail_c = (gt == last) if in_range is None else jnp.logical_and(in_range, gt == last)

        @pl.when(main_c)
        def _main():
            accumulate(False)

        @pl.when(tail_c)
        def _tail():
            accumulate(True)
    else:
        if in_range is None:
            accumulate(False)
        else:
            @pl.when(in_range)
            def _guarded():
                accumulate(False)


def _choose_block_r(n_rows, n_classes, itemsize,
                    target_bytes=12 * 1024 * 1024, max_rows=1024):
    """Rows of 128 voxels per tile, from an honest VMEM working-set estimate:
    double-buffered logits + labels DMA blocks plus ~(C+12) live f32 slabs."""
    per_row = 128 * (2 * n_classes * itemsize + 2 * 4 + (n_classes + 12) * 4)
    br = int(target_bytes // per_row)
    br = max(8, min(br, max_rows))
    br = (br // 8) * 8
    return n_rows if n_rows <= br else br


def _loss_dense(x, lbl, wgt, alpha, smooth, block_r=None):
    b, c, n_vox = x.shape
    rows = n_vox // 128
    x4 = x.reshape(b, c, rows, 128)
    lbl4 = lbl.reshape(b, 1, rows, 128)

    if block_r is None:
        block_r = _choose_block_r(rows, c, x.dtype.itemsize)
    n_tiles = pl.cdiv(rows, block_r)
    needs_row_mask = (rows % block_r) != 0
    num_cores = 2 if n_tiles >= 2 else 1                  # v7x megacore split
    tiles_per_core = pl.cdiv(n_tiles, num_cores)
    padded_tiles = num_cores * tiles_per_core != n_tiles

    kernel = functools.partial(
        _dense_loss_kernel, n_classes=c, block_r=block_r, rows_total=rows,
        n_tiles=n_tiles, tiles_per_core=tiles_per_core,
        needs_row_mask=needs_row_mask, padded_tiles=padded_tiles)

    def row_block(ci, ti):
        return jnp.minimum(ci * tiles_per_core + ti, n_tiles - 1)

    acc = pl.pallas_call(
        kernel,
        out_shape=jax.ShapeDtypeStruct((num_cores * b, 40, 128), jnp.float32),
        grid_spec=pltpu.PrefetchScalarGridSpec(
            num_scalar_prefetch=0,
            grid=(num_cores, b, tiles_per_core),
            in_specs=[
                # logits tile: class on leading axis, dense (rows,128) slabs
                pl.BlockSpec((None, c, block_r, 128),
                             lambda ci, bi, ti: (bi, 0, row_block(ci, ti), 0)),
                # labels tile
                pl.BlockSpec((None, 1, block_r, 128),
                             lambda ci, bi, ti: (bi, 0, row_block(ci, ti), 0)),
                # class weights: (C,) scalars in SMEM
                pl.BlockSpec(memory_space=pltpu.MemorySpace.SMEM),
            ],
            # per-(core,batch) resident (40,128) accumulator (5 x (8,128) rows)
            out_specs=pl.BlockSpec((None, 40, 128),
                                   lambda ci, bi, ti: (ci * b + bi, 0, 0)),
        ),
        compiler_params=pltpu.CompilerParams(
            dimension_semantics=("parallel", "parallel", "arbitrary"),
            vmem_limit_bytes=32 * 1024 * 1024),
    )(x4, lbl4, wgt)

    sums = jnp.sum(acc, axis=(0, 2)).reshape(5, 8).sum(axis=1)   # (5,)
    inter, psum, tsum, cew, wsum = sums[0], sums[1], sums[2], sums[3], sums[4]
    dice = 2.0 * inter / (psum + tsum + smooth)
    ce = cew / wsum
    return (1.0 - alpha) * ce + (1.0 - dice) * alpha


# ---------------------------------------------------------------------------
# Flat fallback (ragged voxel counts, n_vox % 128 != 0) -- previous verified
# kernel, kept only for this case.
# ---------------------------------------------------------------------------
def _flat_loss_kernel(logits_ref, labels_ref, weight_ref, out_ref, *,
                      n_vox, block_n, needs_mask):
    ti = pl.program_id(1)

    @pl.when(ti == 0)
    def _():
        out_ref[...] = jnp.zeros_like(out_ref)

    x = logits_ref[...].astype(jnp.float32)        # (C, TN)
    lbl = labels_ref[...]                          # (1, TN) int32
    w = weight_ref[...].astype(jnp.float32)        # (C, 1)

    if needs_mask:
        pos = lax.broadcasted_iota(jnp.int32, lbl.shape, 1)
        valid = (ti * block_n + pos) < n_vox
        validf = valid.astype(jnp.float32)
        x = jnp.where(valid, x, 0.0)
        lbl = jnp.where(valid, lbl, 0)

    cls_idx = lax.broadcasted_iota(jnp.int32, x.shape, 0)
    onehot = (cls_idx == lbl).astype(jnp.float32)

    m = jnp.max(x, axis=0, keepdims=True)
    e = jnp.exp(x - m)
    denom = jnp.sum(e, axis=0, keepdims=True)
    inv = 1.0 / denom
    logd = jnp.log(denom)

    x_at = jnp.sum(onehot * x, axis=0, keepdims=True)
    w_vox = jnp.sum(onehot * w, axis=0, keepdims=True)
    p_at = jnp.exp(x_at - m) * inv
    p0 = e[0:1, :] * inv
    ce_vox = logd + m - x_at

    fg = (lbl != 0).astype(jnp.float32)
    if needs_mask:
        psum_vox = (1.0 - p0) * validf
        w_vox = w_vox * validf
    else:
        psum_vox = 1.0 - p0

    inter_p = jnp.sum(p_at * fg)
    psum_p = jnp.sum(psum_vox)
    tsum_p = jnp.sum(fg)
    cew_p = jnp.sum(w_vox * ce_vox)
    wsum_p = jnp.sum(w_vox)

    lane = lax.broadcasted_iota(jnp.int32, out_ref.shape, 1)
    packed = (jnp.where(lane == 0, inter_p, 0.0)
              + jnp.where(lane == 1, psum_p, 0.0)
              + jnp.where(lane == 2, tsum_p, 0.0)
              + jnp.where(lane == 3, cew_p, 0.0)
              + jnp.where(lane == 4, wsum_p, 0.0)).astype(jnp.float32)
    out_ref[...] += packed


def _loss_flat(x, lbl, wgt2d, alpha, smooth, block_n=None):
    b, c, n_vox = x.shape
    if block_n is None:
        block_n = min(16384, ((n_vox + 127) // 128) * 128)
    n_tiles = pl.cdiv(n_vox, block_n)
    needs_mask = (n_vox % block_n) != 0

    kernel = functools.partial(_flat_loss_kernel, n_vox=n_vox, block_n=block_n,
                               needs_mask=needs_mask)

    acc = pl.pallas_call(
        kernel,
        out_shape=jax.ShapeDtypeStruct((b, 1, 128), jnp.float32),
        grid_spec=pltpu.PrefetchScalarGridSpec(
            num_scalar_prefetch=0,
            grid=(b, n_tiles),
            in_specs=[
                pl.BlockSpec((None, c, block_n), lambda bi, ti: (bi, 0, ti)),
                pl.BlockSpec((None, 1, block_n), lambda bi, ti: (bi, 0, ti)),
                pl.BlockSpec((c, 1), lambda bi, ti: (0, 0)),
            ],
            out_specs=pl.BlockSpec((None, 1, 128), lambda bi, ti: (bi, 0, 0)),
        ),
        compiler_params=pltpu.CompilerParams(
            dimension_semantics=("parallel", "arbitrary"),
            vmem_limit_bytes=32 * 1024 * 1024),
    )(x, lbl.reshape(b, 1, n_vox), wgt2d)

    inter = jnp.sum(acc[:, 0, 0])
    psum = jnp.sum(acc[:, 0, 1])
    tsum = jnp.sum(acc[:, 0, 2])
    cew = jnp.sum(acc[:, 0, 3])
    wsum = jnp.sum(acc[:, 0, 4])
    dice = 2.0 * inter / (psum + tsum + smooth)
    ce = cew / wsum
    return (1.0 - alpha) * ce + (1.0 - dice) * alpha


# ---------------------------------------------------------------------------
# Public entry point (matches Loss.forward)
# ---------------------------------------------------------------------------
def loss_forward(logits, target, weight, alpha=0.5, block_r=None, block_n=None):
    """logits: (B, C, H, W, S); target: (B, H, W, S) int; weight: (C,)."""
    smooth = 0.01
    b, c, h, w_, s = logits.shape
    n_vox = h * w_ * s

    x = logits.reshape(b, c, n_vox)                # free reshape, no transpose
    lbl = target.reshape(b, n_vox)
    if lbl.dtype != jnp.int32:
        lbl = lbl.astype(jnp.int32)
    # TODO(synk): labels could be shipped as int8 (C <= 127) to cut HBM traffic
    # on v5e; kept int32 for guaranteed lowering.

    if n_vox % 128 == 0:
        wgt = weight.astype(jnp.float32)           # (C,) -> SMEM scalars
        return _loss_dense(x, lbl, wgt, alpha, smooth, block_r=block_r)
    wgt2d = weight.reshape(c, 1).astype(jnp.float32)
    return _loss_flat(x, lbl, wgt2d, alpha, smooth, block_n=block_n)


# ---------------------------------------------------------------------------
# Pure-JAX reference (mirrors the PyTorch module)
# ---------------------------------------------------------------------------
def _reference_loss(logits, target, weight, alpha=0.5):
    smooth = 0.01
    b, c = logits.shape[0], logits.shape[1]
    p = jax.nn.softmax(logits, axis=1)
    oh = jax.nn.one_hot(target, c, axis=-1)
    oh_c = jnp.moveaxis(oh, -1, 1)
    p1 = p.reshape(b, c, -1)[:, 1:, :]
    t1 = oh_c.reshape(b, c, -1)[:, 1:, :]
    inter = jnp.sum(p1 * t1)
    union = jnp.sum(p1) + jnp.sum(t1) + smooth
    dice = 2.0 * inter / union
    logp = jax.nn.log_softmax(logits, axis=1)
    ce_vox = -jnp.sum(oh_c * logp, axis=1)
    w_vox = weight[target]
    ce = jnp.sum(w_vox * ce_vox) / jnp.sum(w_vox)
    return (1.0 - alpha) * ce + (1.0 - dice) * alpha


if __name__ == "__main__":
    key = jax.random.PRNGKey(0)
    weight = jnp.array([0.1, 0.3, 0.25, 0.35], dtype=jnp.float32)

    # 1) dense path, single small tile (R=4 < 8)
    k1, k2 = jax.random.split(key)
    logits = jax.random.normal(k1, (2, 4, 8, 8, 8), dtype=jnp.float32)
    target = jax.random.randint(k2, (2, 8, 8, 8), 0, 4, dtype=jnp.int32)
    out = jax.block_until_ready(loss_forward(logits, target, weight, alpha=0.5))
    ref = _reference_loss(logits, target, weight, alpha=0.5)
    assert jnp.abs(out - ref) < 1e-4, (out, ref)

    # 2) ragged voxel count -> flat fallback path with masked tail
    k3, k4 = jax.random.split(k2)
    logits2 = jax.random.normal(k3, (2, 4, 5, 6, 7), dtype=jnp.float32)
    target2 = jax.random.randint(k4, (2, 5, 6, 7), 0, 4, dtype=jnp.int32)
    out2 = jax.block_until_ready(loss_forward(logits2, target2, weight, 0.5))
    ref2 = _reference_loss(logits2, target2, weight, 0.5)
    assert jnp.abs(out2 - ref2) < 1e-4, (out2, ref2)

    # 3) dense multi-tile path: core split + padded core tile + masked row tail
    k5, k6 = jax.random.split(k4)
    logits3 = jax.random.normal(k5, (2, 4, 16, 16, 10), dtype=jnp.float32)
    target3 = jax.random.randint(k6, (2, 16, 16, 10), 0, 4, dtype=jnp.int32)
    ref3 = _reference_loss(logits3, target3, weight, 0.5)
    out3a = jax.block_until_ready(
        loss_forward(logits3, target3, weight, 0.5, block_r=8))
    assert jnp.abs(out3a - ref3) < 1e-4, (out3a, ref3)
    out3b = jax.block_until_ready(
        loss_forward(logits3, target3, weight, 0.5, block_r=16))
    assert jnp.abs(out3b - ref3) < 1e-4, (out3b, ref3)

    # 4) bf16 logits on the dense path, B=1 with the 2-way core split
    k7, k8 = jax.random.split(k6)
    logits4 = jax.random.normal(k7, (1, 4, 16, 16, 16), dtype=jnp.float32
                                ).astype(jnp.bfloat16)
    target4 = jax.random.randint(k8, (1, 16, 16, 16), 0, 4, dtype=jnp.int32)
    out4 = jax.block_until_ready(
        loss_forward(logits4, target4, weight, 0.5, block_r=16))
    ref4 = _reference_loss(logits4.astype(jnp.float32), target4, weight, 0.5)
    assert jnp.abs(out4 - ref4) < 2e-4, (out4, ref4)

    print("KERNEL_OK")
</pallas_src>

<mosaic_0001>
module attributes {stable_mosaic.version = 11 : i64} {
  func.func @_dense_loss_kernel(%arg0: i32, %arg1: i32, %arg2: i32, %arg3: memref<1x4x4x128xf32, #tpu.memory_space<vmem>>, %arg4: memref<1x1x4x128xi32, #tpu.memory_space<vmem>>, %arg5: memref<4xf32, #tpu.memory_space<smem>>, %arg6: memref<1x40x128xf32, #tpu.memory_space<vmem>>) attributes {dimension_semantics = [#tpu.dimension_semantics<parallel>, #tpu.dimension_semantics<parallel>, #tpu.dimension_semantics<arbitrary>], iteration_bounds = array<i64: 1, 2, 1>, scalar_prefetch = 0 : i64, scratch_operands = 0 : i64, tpu.core_type = #tpu.core_type<tc>, window_params = [{transform_indices = @transform_0, window_bounds = array<i64: 1, 4, 4, 128>}, {transform_indices = @transform_1, window_bounds = array<i64: 1, 1, 4, 128>}, {transform_indices = @transform_2, window_bounds = array<i64: 4>}, {transform_indices = @transform_3, window_bounds = array<i64: 1, 40, 128>}]} {
    %c0_i32 = arith.constant 0 : i32
    %0 = arith.cmpi eq, %arg2, %c0_i32 : i32
    %1 = arith.extui %0 : i1 to i32
    %c0_i32_0 = arith.constant 0 : i32
    %2 = arith.cmpi ne, %1, %c0_i32_0 : i32
    scf.if %2 {
      %cst_54 = arith.constant 0.000000e+00 : f32
      %105 = vector.broadcast %cst_54 : f32 to vector<40x128xf32>
      %c0_55 = arith.constant 0 : index
      %c0_56 = arith.constant 0 : index
      %c0_57 = arith.constant 0 : index
      %106 = vector.load %arg6[%c0_55, %c0_56, %c0_57] : memref<1x40x128xf32, #tpu.memory_space<vmem>>, vector<1x40x128xf32>
      %107 = vector.shape_cast %106 : vector<1x40x128xf32> to vector<40x128xf32>
      %108 = vector.shape_cast %105 : vector<40x128xf32> to vector<1x40x128xf32>
      tpu.vector_store %arg6[%c0_55, %c0_56, %c0_57], %108 {strides = array<i32>} : memref<1x40x128xf32, #tpu.memory_space<vmem>>, vector<1x40x128xf32>,
    } else {
    }
    %c0 = arith.constant 0 : index
    %c0_1 = arith.constant 0 : index
    %c0_2 = arith.constant 0 : index
    %c0_3 = arith.constant 0 : index
    %3 = vector.load %arg4[%c0, %c0_1, %c0_2, %c0_3] : memref<1x1x4x128xi32, #tpu.memory_space<vmem>>, vector<1x1x4x128xi32>
    %4 = vector.shape_cast %3 : vector<1x1x4x128xi32> to vector<4x128xi32>
    %c0_4 = arith.constant 0 : index
    %c0_5 = arith.constant 0 : index
    %c0_6 = arith.constant 0 : index
    %c0_7 = arith.constant 0 : index
    %5 = vector.load %arg3[%c0_4, %c0_5, %c0_6, %c0_7] : memref<1x4x4x128xf32, #tpu.memory_space<vmem>>, vector<1x1x4x128xf32>
    %6 = vector.shape_cast %5 : vector<1x1x4x128xf32> to vector<4x128xf32>
    %c0_8 = arith.constant 0 : index
    %c1 = arith.constant 1 : index
    %c0_9 = arith.constant 0 : index
    %c0_10 = arith.constant 0 : index
    %7 = vector.load %arg3[%c0_8, %c1, %c0_9, %c0_10] : memref<1x4x4x128xf32, #tpu.memory_space<vmem>>, vector<1x1x4x128xf32>
    %8 = vector.shape_cast %7 : vector<1x1x4x128xf32> to vector<4x128xf32>
    %c0_11 = arith.constant 0 : index
    %c2 = arith.constant 2 : index
    %c0_12 = arith.constant 0 : index
    %c0_13 = arith.constant 0 : index
    %9 = vector.load %arg3[%c0_11, %c2, %c0_12, %c0_13] : memref<1x4x4x128xf32, #tpu.memory_space<vmem>>, vector<1x1x4x128xf32>
    %10 = vector.shape_cast %9 : vector<1x1x4x128xf32> to vector<4x128xf32>
    %c0_14 = arith.constant 0 : index
    %c3 = arith.constant 3 : index
    %c0_15 = arith.constant 0 : index
    %c0_16 = arith.constant 0 : index
    %11 = vector.load %arg3[%c0_14, %c3, %c0_15, %c0_16] : memref<1x4x4x128xf32, #tpu.memory_space<vmem>>, vector<1x1x4x128xf32>
    %12 = vector.shape_cast %11 : vector<1x1x4x128xf32> to vector<4x128xf32>
    %13 = arith.maximumf %6, %8 : vector<4x128xf32>
    %14 = arith.maximumf %13, %10 : vector<4x128xf32>
    %15 = arith.maximumf %14, %12 : vector<4x128xf32>
    %16 = arith.subf %6, %15 : vector<4x128xf32>
    %17 = math.exp %16 : vector<4x128xf32>
    %c0_17 = arith.constant 0 : index
    %18 = memref.load %arg5[%c0_17] : memref<4xf32, #tpu.memory_space<smem>>
    %19 = vector.broadcast %18 : f32 to vector<4x128xf32>
    %20 = arith.subf %8, %15 : vector<4x128xf32>
    %21 = math.exp %20 : vector<4x128xf32>
    %22 = arith.addf %17, %21 : vector<4x128xf32>
    %c1_i32 = arith.constant 1 : i32
    %23 = vector.broadcast %c1_i32 : i32 to vector<4x128xi32>
    %24 = arith.cmpi eq, %4, %23 : vector<4x128xi32>
    %25 = arith.select %24, %8, %6 : vector<4x128xi1>, vector<4x128xf32>
    %26 = arith.select %24, %21, %17 : vector<4x128xi1>, vector<4x128xf32>
    %c1_18 = arith.constant 1 : index
    %27 = memref.load %arg5[%c1_18] : memref<4xf32, #tpu.memory_space<smem>>
    %28 = vector.broadcast %27 : f32 to vector<4x128xf32>
    %29 = arith.select %24, %28, %19 : vector<4x128xi1>, vector<4x128xf32>
    %30 = arith.subf %10, %15 : vector<4x128xf32>
    %31 = math.exp %30 : vector<4x128xf32>
    %32 = arith.addf %22, %31 : vector<4x128xf32>
    %c2_i32 = arith.constant 2 : i32
    %33 = vector.broadcast %c2_i32 : i32 to vector<4x128xi32>
    %34 = arith.cmpi eq, %4, %33 : vector<4x128xi32>
    %35 = arith.select %34, %10, %25 : vector<4x128xi1>, vector<4x128xf32>
    %36 = arith.select %34, %31, %26 : vector<4x128xi1>, vector<4x128xf32>
    %c2_19 = arith.constant 2 : index
    %37 = memref.load %arg5[%c2_19] : memref<4xf32, #tpu.memory_space<smem>>
    %38 = vector.broadcast %37 : f32 to vector<4x128xf32>
    %39 = arith.select %34, %38, %29 : vector<4x128xi1>, vector<4x128xf32>
    %40 = arith.subf %12, %15 : vector<4x128xf32>
    %41 = math.exp %40 : vector<4x128xf32>
    %42 = arith.addf %32, %41 : vector<4x128xf32>
    %c3_i32 = arith.constant 3 : i32
    %43 = vector.broadcast %c3_i32 : i32 to vector<4x128xi32>
    %44 = arith.cmpi eq, %4, %43 : vector<4x128xi32>
    %45 = arith.select %44, %12, %35 : vector<4x128xi1>, vector<4x128xf32>
    %46 = arith.select %44, %41, %36 : vector<4x128xi1>, vector<4x128xf32>
    %c3_20 = arith.constant 3 : index
    %47 = memref.load %arg5[%c3_20] : memref<4xf32, #tpu.memory_space<smem>>
    %48 = vector.broadcast %47 : f32 to vector<4x128xf32>
    %49 = arith.select %44, %48, %39 : vector<4x128xi1>, vector<4x128xf32>
    %cst = arith.constant 1.000000e+00 : f32
    %50 = vector.broadcast %cst : f32 to vector<4x128xf32>
    %51 = arith.divf %50, %42 : vector<4x128xf32>
    %52 = arith.mulf %46, %51 : vector<4x128xf32>
    %53 = arith.mulf %17, %51 : vector<4x128xf32>
    %54 = math.log %42 : vector<4x128xf32>
    %55 = arith.subf %15, %45 : vector<4x128xf32>
    %56 = arith.addf %54, %55 : vector<4x128xf32>
    %c0_i32_21 = arith.constant 0 : i32
    %57 = vector.broadcast %c0_i32_21 : i32 to vector<4x128xi32>
    %58 = arith.cmpi ne, %4, %57 : vector<4x128xi32>
    %59 = arith.extui %58 : vector<4x128xi1> to vector<4x128xi32>
    %60 = arith.sitofp %59 : vector<4x128xi32> to vector<4x128xf32>
    %cst_22 = arith.constant 1.000000e+00 : f32
    %61 = vector.broadcast %cst_22 : f32 to vector<4x128xf32>
    %62 = arith.subf %61, %53 : vector<4x128xf32>
    %63 = arith.mulf %52, %60 : vector<4x128xf32>
    %64 = arith.mulf %49, %56 : vector<4x128xf32>
    %c0_23 = arith.constant 0 : index
    %c0_24 = arith.constant 0 : index
    %c0_25 = arith.constant 0 : index
    %65 = vector.load %arg6[%c0_23, %c0_24, %c0_25] : memref<1x40x128xf32, #tpu.memory_space<vmem>>, vector<1x1x128xf32>
    %66 = vector.shape_cast %65 : vector<1x1x128xf32> to vector<1x128xf32>
    %cst_26 = arith.constant dense<0.000000e+00> : vector<128xf32>
    %67 = vector.multi_reduction <add>, %63, %cst_26 [0] : vector<4x128xf32> to vector<128xf32>
    %68 = vector.shape_cast %67 : vector<128xf32> to vector<1x128xf32>
    %69 = arith.addf %66, %68 : vector<1x128xf32>
    %c0_27 = arith.constant 0 : index
    %c0_28 = arith.constant 0 : index
    %c0_29 = arith.constant 0 : index
    %70 = vector.load %arg6[%c0_27, %c0_28, %c0_29] : memref<1x40x128xf32, #tpu.memory_space<vmem>>, vector<1x1x128xf32>
    %71 = vector.shape_cast %70 : vector<1x1x128xf32> to vector<1x128xf32>
    %72 = vector.shape_cast %69 : vector<1x128xf32> to vector<1x1x128xf32>
    tpu.vector_store %arg6[%c0_27, %c0_28, %c0_29], %72 {strides = array<i32>} : memref<1x40x128xf32, #tpu.memory_space<vmem>>, vector<1x1x128xf32>,
    %c0_30 = arith.constant 0 : index
    %c8 = arith.constant 8 : index
    %c0_31 = arith.constant 0 : index
    %73 = vector.load %arg6[%c0_30, %c8, %c0_31] : memref<1x40x128xf32, #tpu.memory_space<vmem>>, vector<1x1x128xf32>
    %74 = vector.shape_cast %73 : vector<1x1x128xf32> to vector<1x128xf32>
    %cst_32 = arith.constant dense<0.000000e+00> : vector<128xf32>
    %75 = vector.multi_reduction <add>, %62, %cst_32 [0] : vector<4x128xf32> to vector<128xf32>
    %76 = vector.shape_cast %75 : vector<128xf32> to vector<1x128xf32>
    %77 = arith.addf %74, %76 : vector<1x128xf32>
    %c0_33 = arith.constant 0 : index
    %c8_34 = arith.constant 8 : index
    %c0_35 = arith.constant 0 : index
    %78 = vector.load %arg6[%c0_33, %c8_34, %c0_35] : memref<1x40x128xf32, #tpu.memory_space<vmem>>, vector<1x1x128xf32>
    %79 = vector.shape_cast %78 : vector<1x1x128xf32> to vector<1x128xf32>
    %80 = vector.shape_cast %77 : vector<1x128xf32> to vector<1x1x128xf32>
    tpu.vector_store %arg6[%c0_33, %c8_34, %c0_35], %80 {strides = array<i32>} : memref<1x40x128xf32, #tpu.memory_space<vmem>>, vector<1x1x128xf32>,
    %c0_36 = arith.constant 0 : index
    %c16 = arith.constant 16 : index
    %c0_37 = arith.constant 0 : index
    %81 = vector.load %arg6[%c0_36, %c16, %c0_37] : memref<1x40x128xf32, #tpu.memory_space<vmem>>, vector<1x1x128xf32>
    %82 = vector.shape_cast %81 : vector<1x1x128xf32> to vector<1x128xf32>
    %cst_38 = arith.constant dense<0.000000e+00> : vector<128xf32>
    %83 = vector.multi_reduction <add>, %60, %cst_38 [0] : vector<4x128xf32> to vector<128xf32>
    %84 = vector.shape_cast %83 : vector<128xf32> to vector<1x128xf32>
    %85 = arith.addf %82, %84 : vector<1x128xf32>
    %c0_39 = arith.constant 0 : index
    %c16_40 = arith.constant 16 : index
    %c0_41 = arith.constant 0 : index
    %86 = vector.load %arg6[%c0_39, %c16_40, %c0_41] : memref<1x40x128xf32, #tpu.memory_space<vmem>>, vector<1x1x128xf32>
    %87 = vector.shape_cast %86 : vector<1x1x128xf32> to vector<1x128xf32>
    %88 = vector.shape_cast %85 : vector<1x128xf32> to vector<1x1x128xf32>
    tpu.vector_store %arg6[%c0_39, %c16_40, %c0_41], %88 {strides = array<i32>} : memref<1x40x128xf32, #tpu.memory_space<vmem>>, vector<1x1x128xf32>,
    %c0_42 = arith.constant 0 : index
    %c24 = arith.constant 24 : index
    %c0_43 = arith.constant 0 : index
    %89 = vector.load %arg6[%c0_42, %c24, %c0_43] : memref<1x40x128xf32, #tpu.memory_space<vmem>>, vector<1x1x128xf32>
    %90 = vector.shape_cast %89 : vector<1x1x128xf32> to vector<1x128xf32>
    %cst_44 = arith.constant dense<0.000000e+00> : vector<128xf32>
    %91 = vector.multi_reduction <add>, %64, %cst_44 [0] : vector<4x128xf32> to vector<128xf32>
    %92 = vector.shape_cast %91 : vector<128xf32> to vector<1x128xf32>
    %93 = arith.addf %90, %92 : vector<1x128xf32>
    %c0_45 = arith.constant 0 : index
    %c24_46 = arith.constant 24 : index
    %c0_47 = arith.constant 0 : index
    %94 = vector.load %arg6[%c0_45, %c24_46, %c0_47] : memref<1x40x128xf32, #tpu.memory_space<vmem>>, vector<1x1x128xf32>
    %95 = vector.shape_cast %94 : vector<1x1x128xf32> to vector<1x128xf32>
    %96 = vector.shape_cast %93 : vector<1x128xf32> to vector<1x1x128xf32>
    tpu.vector_store %arg6[%c0_45, %c24_46, %c0_47], %96 {strides = array<i32>} : memref<1x40x128xf32, #tpu.memory_space<vmem>>, vector<1x1x128xf32>,
    %c0_48 = arith.constant 0 : index
    %c32 = arith.constant 32 : index
    %c0_49 = arith.constant 0 : index
    %97 = vector.load %arg6[%c0_48, %c32, %c0_49] : memref<1x40x128xf32, #tpu.memory_space<vmem>>, vector<1x1x128xf32>
    %98 = vector.shape_cast %97 : vector<1x1x128xf32> to vector<1x128xf32>
    %cst_50 = arith.constant dense<0.000000e+00> : vector<128xf32>
    %99 = vector.multi_reduction <add>, %49, %cst_50 [0] : vector<4x128xf32> to vector<128xf32>
    %100 = vector.shape_cast %99 : vector<128xf32> to vector<1x128xf32>
    %101 = arith.addf %98, %100 : vector<1x128xf32>
    %c0_51 = arith.constant 0 : index
    %c32_52 = arith.constant 32 : index
    %c0_53 = arith.constant 0 : index
    %102 = vector.load %arg6[%c0_51, %c32_52, %c0_53] : memref<1x40x128xf32, #tpu.memory_space<vmem>>, vector<1x1x128xf32>
    %103 = vector.shape_cast %102 : vector<1x1x128xf32> to vector<1x128xf32>
    %104 = vector.shape_cast %101 : vector<1x128xf32> to vector<1x1x128xf32>
    tpu.vector_store %arg6[%c0_51, %c32_52, %c0_53], %104 {strides = array<i32>} : memref<1x40x128xf32, #tpu.memory_space<vmem>>, vector<1x1x128xf32>,
    return
  }
  func.func @transform_0(%arg0: i32, %arg1: i32, %arg2: i32) -> (i32, i32, i32, i32) {
    %c1_i32 = arith.constant 1 : i32
    %0 = arith.muli %arg0, %c1_i32 : i32
    %1 = arith.addi %0, %arg2 : i32
    %c0_i32 = arith.constant 0 : i32
    %2 = arith.minsi %1, %c0_i32 : i32
    %c0_i32_0 = arith.constant 0 : i32
    %c0_i32_1 = arith.constant 0 : i32
    %c0_i32_2 = arith.constant 0 : i32
    return %arg1, %c0_i32_0, %2, %c0_i32_1 : i32, i32, i32, i32
  }
  func.func @transform_1(%arg0: i32, %arg1: i32, %arg2: i32) -> (i32, i32, i32, i32) {
    %c1_i32 = arith.constant 1 : i32
    %0 = arith.muli %arg0, %c1_i32 : i32
    %1 = arith.addi %0, %arg2 : i32
    %c0_i32 = arith.constant 0 : i32
    %2 = arith.minsi %1, %c0_i32 : i32
    %c0_i32_0 = arith.constant 0 : i32
    %c0_i32_1 = arith.constant 0 : i32
    %c0_i32_2 = arith.constant 0 : i32
    return %arg1, %c0_i32_0, %2, %c0_i32_1 : i32, i32, i32, i32
  }
  func.func @transform_2(%arg0: i32, %arg1: i32, %arg2: i32) -> i32 {
    %c0_i32 = arith.constant 0 : i32
    %c0_i32_0 = arith.constant 0 : i32
    return %c0_i32 : i32
  }
  func.func @transform_3(%arg0: i32, %arg1: i32, %arg2: i32) -> (i32, i32, i32) {
    %c2_i32 = arith.constant 2 : i32
    %0 = arith.muli %arg0, %c2_i32 : i32
    %1 = arith.addi %0, %arg1 : i32
    %c0_i32 = arith.constant 0 : i32
    %c0_i32_0 = arith.constant 0 : i32
    %c0_i32_1 = arith.constant 0 : i32
    return %1, %c0_i32, %c0_i32_0 : i32, i32, i32
  }
}

</mosaic_0001>

<llo_original>
// kernel: tpu_custom_call.1
$region0: #{tpu_custom_call.1}
  #allocation0 [shape = 'u32[]', space=smem, size = 0x4, offset = 0x4, fixed_abs, tag = 'smem constant byte address 0x4 - core index']
  #allocation1 [shape = 'u32[144,128]{1,0:T(1,128)}', space=vmem, size = 0x12000, scoped, tag = 'internal scratch']
  %s0 = inlined_call_operand.hbm [shape: f32[2,4,4,128], index: 0, kind: input, shape index: {}]
  %s1 = inlined_call_operand.hbm [shape: s32[2,1,4,128], index: 1, kind: input, shape index: {}]
  %s2 = inlined_call_operand.vmem [shape: f32[4], index: 2, kind: input, shape index: {}]
  %s3 = inlined_call_operand.hbm [shape: f32[2,40,128], index: 3, kind: output, shape index: {}]
  %s4 = sld [smem:[#allocation0]]
  $region61: #{tpu_custom_call.1} parent=0
    _
  %s6 = ssub.s32 1, %s4
  %s7 = scalar_select 0, %s6, %s4
  $region1: #{tpu_custom_call.1} parent=0
    #allocation2 [shape = 'u8[16384]{0}', space=vmem, size = 0x4000, scoped, tag = 'input window, operand 0']
    #allocation3 [shape = 's32[2]{0}', space=sflag, size = 0x8, scoped, tag = 'scoped memory for tpu_custom_call.1']
    #allocation4 [shape = 's32[2]{0}', space=sflag, size = 0x8, scoped, tag = 'scoped memory for tpu_custom_call.1']
    #allocation5 [shape = 's32[2]{0}', space=sflag, size = 0x8, scoped, tag = 'scoped memory for tpu_custom_call.1']
    #allocation6 [shape = 'u8[4096]{0}', space=vmem, size = 0x1000, scoped, tag = 'input window, operand 1']
    #allocation7 [shape = 's32[2]{0}', space=sflag, size = 0x8, scoped, tag = 'scoped memory for tpu_custom_call.1']
    #allocation8 [shape = 'u8[512]{0}', space=smem, size = 0x200, scoped, tag = 'input window, operand 2, single buffered']
    #allocation9 [shape = 'u8[40960]{0}', space=vmem, size = 0xa000, scoped, tag = 'output window, operand 0']
    %8 = vsyncpa [#allocation3], 0
    %s9 = scalar_lea.sflag [#allocation3], 1
    %10 = vsyncpa %s9, 0
    %11 = vsyncpa [#allocation7], 0
    %s12 = scalar_lea.sflag [#allocation7], 1
    %13 = vsyncpa %s12, 0
    %14 = vsyncpa [#allocation5], 0
    %15 = vsyncpa [#allocation4], 0
    %s16 = scalar_lea.sflag [#allocation4], 1
    %17 = vsyncpa %s16, 0
    loop: start=0, step=1, limit=4
    $region2: #{tpu_custom_call.1} parent=1 // loop_pre_header
      _
    $region3: #{tpu_custom_call.1} parent=1 // loop_header
      %s19 = sphi 0, %s23
      %p20 = scmp.ge.s32.totalorder %s19, 4
      %s26 = sphi 0, %s45
      %s27 = sphi 0, %s41
      %s28 = sphi 0, %s37
      %s29 = sphi 0, %s26
      %s30 = sphi 0, %s27
      %s31 = sphi 0, %s28
      %s32 = sphi 0, %s29
      %s33 = sphi 0, %s30
      %s34 = sphi 0, %s31
      %s56 = sphi 0, %s58
      %s59 = sphi 0, %s56
      %s60 = sphi 0, %s59
      %s76 = sphi 0, %s60
      %s90 = sphi 0, %s92
      %s93 = sphi 0, %s90
      %s94 = sphi 0, %s93
      %s110 = sphi 0, %s94
      %s114 = sphi 0, %s114
      %s116 = sphi 0, %s114
      %s117 = sphi 0, %s116
      %s131 = sphi 0, %s117
      %s141 = sphi 0, %s143
      %s144 = sphi 0, %s141
      %s145 = sphi 0, %s144
      %s161 = sphi 0, %s145
    $region4: #{tpu_custom_call.1} parent=1 // loop_header_branch
      %22 = sbr.rel (%p20) target = $region8
    $region5: #{tpu_custom_call.1} parent=1 // loop_body
      %s24 = ssub.s32 %s19, 1
      %s25 = ssub.s32 %s19, 2
      %s35 = sadd.s32 1, %s28
      %p36 = scmp.ge.s32.totalorder %s35, 1
      %s37 = scalar_select %p36, 0, %s35
      %s38 = sadd.s32 1, %s27
      %s39 = scalar_select %p36, %s38, %s27
      %p40 = scmp.ge.s32.totalorder %s39, 2
      %s41 = scalar_select %p40, 0, %s39
      %s42 = sadd.s32 1, %s26
      %s43 = scalar_select %p40, %s42, %s26
      %p44 = scmp.ge.s32.totalorder %s43, 1
      %s45 = scalar_select %p44, 0, %s43
      %s46 = sadd.s32 %s26, %s28
      %p47 = scmp.lt.s32.totalorder %s46, 0
      %s48 = scalar_select %p47, %s46, 0
      %s49 = sadd.s32 %s45, %s37
      %p50 = scmp.lt.s32.totalorder %s49, 0
      %s51 = scalar_select %p50, %s49, 0
      %s52 = ssub.s32 %s27, %s41
      %s53 = ssub.s32 %s48, %s51
      %s54 = sor.u32 %s52, %s53
      %p55 = scmp.eq.s32.totalorder %s54, 0
      %s57 = sadd.s32 %s56, 1
      %s58 = scalar_select %p55, %s56, %s57
      %p61 = pneg %p55
      %p62 = scmp.eq.s32.totalorder %s19, 1
      %p63 = por %p61, %p62
      %p64 = scmp.ne.s32.totalorder %s56, %s59
      %p65 = scmp.eq.s32.totalorder %s19, 0
      %p66 = por %p64, %p65
      %p67 = scmp.ne.s32.totalorder %s56, %s59
      %p68 = scmp.eq.s32.totalorder %s24, 1
      %p69 = por %p67, %p68
      %p70 = scmp.ne.s32.totalorder %s59, %s60
      %p71 = scmp.eq.s32.totalorder %s24, 0
      %p72 = por %p70, %p71
      %p73 = scmp.ne.s32.totalorder %s59, %s60
      %p74 = scmp.eq.s32.totalorder %s25, 1
      %p75 = por %p73, %p74
      %p77 = scmp.ne.s32.totalorder %s60, %s76
      %p78 = scmp.eq.s32.totalorder %s25, 0
      %p79 = por %p77, %p78
      %s80 = sadd.s32 %s26, %s28
      %p81 = scmp.lt.s32.totalorder %s80, 0
      %s82 = scalar_select %p81, %s80, 0
      %s83 = sadd.s32 %s45, %s37
      %p84 = scmp.lt.s32.totalorder %s83, 0
      %s85 = scalar_select %p84, %s83, 0
      %s86 = ssub.s32 %s27, %s41
      %s87 = ssub.s32 %s82, %s85
      %s88 = sor.u32 %s86, %s87
      %p89 = scmp.eq.s32.totalorder %s88, 0
      %s91 = sadd.s32 %s90, 1
      %s92 = scalar_select %p89, %s90, %s91
      %p95 = pneg %p89
      %p96 = scmp.eq.s32.totalorder %s19, 1
      %p97 = por %p95, %p96
      %p98 = scmp.ne.s32.totalorder %s90, %s93
      %p99 = scmp.eq.s32.totalorder %s19, 0
      %p100 = por %p98, %p99
      %p101 = scmp.ne.s32.totalorder %s90, %s93
      %p102 = scmp.eq.s32.totalorder %s24, 1
      %p103 = por %p101, %p102
      %p104 = scmp.ne.s32.totalorder %s93, %s94
      %p105 = scmp.eq.s32.totalorder %s24, 0
      %p106 = por %p104, %p105
      %p107 = scmp.ne.s32.totalorder %s93, %s94
      %p108 = scmp.eq.s32.totalorder %s25, 1
      %p109 = por %p107, %p108
      %p111 = scmp.ne.s32.totalorder %s94, %s110
      %p112 = scmp.eq.s32.totalorder %s25, 0
      %p113 = por %p111, %p112
      %s115 = sadd.s32 %s114, 1
      %p118 = scmp.eq.s32.totalorder %s19, 1
      %p119 = scmp.ne.s32.totalorder %s114, %s116
      %p120 = scmp.eq.s32.totalorder %s19, 0
      %p121 = por %p119, %p120
      %p122 = scmp.ne.s32.totalorder %s114, %s116
      %p123 = scmp.eq.s32.totalorder %s24, 1
      %p124 = por %p122, %p123
      %p125 = scmp.ne.s32.totalorder %s116, %s117
      %p126 = scmp.eq.s32.totalorder %s24, 0
      %p127 = por %p125, %p126
      %p128 = scmp.ne.s32.totalorder %s116, %s117
      %p129 = scmp.eq.s32.totalorder %s25, 1
      %p130 = por %p128, %p129
      %p132 = scmp.ne.s32.totalorder %s117, %s131
      %p133 = scmp.eq.s32.totalorder %s25, 0
      %p134 = por %p132, %p133
      %s135 = smul.u32 %s26, 2
      %s136 = sadd.s32 %s135, %s27
      %s137 = smul.u32 %s45, 2
      %s138 = sadd.s32 %s137, %s41
      %s139 = ssub.s32 %s136, %s138
      %p140 = scmp.eq.s32.totalorder %s139, 0
      %s142 = sadd.s32 %s141, 1
      %s143 = scalar_select %p140, %s141, %s142
      %p146 = pneg %p140
      %p147 = scmp.eq.s32.totalorder %s19, 1
      %p148 = por %p146, %p147
      %p149 = scmp.ne.s32.totalorder %s141, %s144
      %p150 = scmp.eq.s32.totalorder %s19, 0
      %p151 = por %p149, %p150
      %p152 = scmp.ne.s32.totalorder %s141, %s144
      %p153 = scmp.eq.s32.totalorder %s24, 1
      %p154 = por %p152, %p153
      %p155 = scmp.ne.s32.totalorder %s144, %s145
      %p156 = scmp.eq.s32.totalorder %s24, 0
      %p157 = por %p155, %p156
      %p158 = scmp.ne.s32.totalorder %s144, %s145
      %p159 = scmp.eq.s32.totalorder %s25, 1
      %p160 = por %p158, %p159
      %p162 = scmp.ne.s32.totalorder %s145, %s161
      %p163 = scmp.eq.s32.totalorder %s25, 0
      %p164 = por %p162, %p163
      %p165 = scmp.le.s32.totalorder 1, %s19
      %p166 = scmp.lt.s32.totalorder %s19, 3
      %p167 = pnand %p165, %p166
      %p168 = pneg %p167
      // Predicated region
      $region9: #{tpu_custom_call.1} parent=5 // pred_check
        _
      $region10: #{tpu_custom_call.1} parent=5 // pred_check_branch
        %170 = sbr.rel (%p167) target = $region12
      $region11: #{tpu_custom_call.1} parent=5 // pred_region
        %s171 = ssub.s32 %s19, 1
        // Predicated region
        $region13: #{tpu_custom_call.1} parent=11 // pred_check
          %p172 = pneg %p127
        $region14: #{tpu_custom_call.1} parent=11 // pred_check_branch
          %174 = sbr.rel (%p172) target = $region16
        $region15: #{tpu_custom_call.1} parent=11 // pred_region
          %s176 = ssub.s32 16, 16
          %177 = vsyncadd [#allocation5], %s176
          %s179 = sshll.u32 %s2, 4
          %s180 = int_to_ptr.vmem [resolvable:$true] %s179
          %182 = dma.vmem_to_smem %s180, 16, [#allocation8], [#allocation5]
        $region16: #{tpu_custom_call.1} parent=11 // pred_fallthru
          _
      $region12: #{tpu_custom_call.1} parent=5 // pred_fallthru
        _
      %p183 = scmp.lt.s32.totalorder %s19, 2
      // Predicated region
      $region17: #{tpu_custom_call.1} parent=5 // pred_check
        %p184 = pneg %p183
      $region18: #{tpu_custom_call.1} parent=5 // pred_check_branch
        %186 = sbr.rel (%p184) target = $region20
      $region19: #{tpu_custom_call.1} parent=5 // pred_region
        // Predicated region
        $region21: #{tpu_custom_call.1} parent=19 // pred_check
          %p187 = pneg %p66
        $region22: #{tpu_custom_call.1} parent=19 // pred_check_branch
          %189 = sbr.rel (%p187) target = $region24
        $region23: #{tpu_custom_call.1} parent=19 // pred_region
          %s190 = sand.u32 %s56, 1
          %s191 = scalar_lea.sflag [#allocation3], %s190
          %s192 = sand.u32 %s56, 1
          %s193 = smul.addr %s192, 16
          %s194 = scalar_lea.vmem [#allocation2], %s193
          %s195 = sadd.s32 %s26, %s28
          %p196 = scmp.lt.s32.totalorder %s195, 0
          %s197 = scalar_select %p196, %s195, 0
          %s199 = ssub.s32 256, 256
          %200 = vsyncadd %s191, %s199
          %s201 = smul.addr %s27, 4
          %s202 = sadd.s32 %s197, %s201
          %s203 = smul.addr %s202, 64
          %s204 = scalar_lea.hbm %s0, %s203
          %s205 = sshll.u32 %s194, 4
          %s206 = int_to_ptr.vmem [resolvable:$true] %s205
          %211 = dma.hbm_to_vmem [thread:$0]  %s204, 256, %s206, %s191, 64, 64, 4
        $region24: #{tpu_custom_call.1} parent=19 // pred_fallthru
          _
        // Predicated region
        $region25: #{tpu_custom_call.1} parent=19 // pred_check
          %p212 = pneg %p100
        $region26: #{tpu_custom_call.1} parent=19 // pred_check_branch
          %214 = sbr.rel (%p212) target = $region28
        $region27: #{tpu_custom_call.1} parent=19 // pred_region
          %s215 = sand.u32 %s90, 1
          %s216 = scalar_lea.sflag [#allocation7], %s215
          %s217 = sand.u32 %s90, 1
          %s218 = smul.addr %s217, 4
          %s219 = scalar_lea.vmem [#allocation6], %s218
          %s220 = sadd.s32 %s26, %s28
          %p221 = scmp.lt.s32.totalorder %s220, 0
          %s222 = scalar_select %p221, %s220, 0
          %s224 = ssub.s32 64, 64
          %225 = vsyncadd %s216, %s224
          %s226 = sadd.s32 %s222, %s27
          %s227 = smul.addr %s226, 64
          %s228 = scalar_lea.hbm %s1, %s227
          %s230 = sshll.u32 %s219, 4
          %s231 = int_to_ptr.vmem [resolvable:$true] %s230
          %233 = dma.hbm_to_vmem [thread:$0]  %s228, 64, %s231, %s216
        $region28: #{tpu_custom_call.1} parent=19 // pred_fallthru
          _
      $region20: #{tpu_custom_call.1} parent=5 // pred_fallthru
        _
      %p234 = scmp.le.s32.totalorder 1, %s19
      %p235 = scmp.lt.s32.totalorder %s19, 3
      %p236 = pnand %p234, %p235
      %p237 = pneg %p236
      // Predicated region
      $region29: #{tpu_custom_call.1} parent=5 // pred_check
        _
      $region30: #{tpu_custom_call.1} parent=5 // pred_check_branch
        %239 = sbr.rel (%p236) target = $region32
      $region31: #{tpu_custom_call.1} parent=5 // pred_region
        %s240 = ssub.s32 %s19, 1
        %s241 = sand.u32 %s59, 1
        %s242 = scalar_lea.sflag [#allocation3], %s241
        %s243 = sand.u32 %s59, 1
        %s244 = smul.addr %s243, 16
        %s245 = scalar_lea.vmem [#allocation2], %s244
        // Predicated region
        $region33: #{tpu_custom_call.1} parent=31 // pred_check
          %p246 = pneg %p72
        $region34: #{tpu_custom_call.1} parent=31 // pred_check_branch
          %248 = sbr.rel (%p246) target = $region36
        $region35: #{tpu_custom_call.1} parent=31 // pred_region
          %249 = dma.done %s242, 256
        $region36: #{tpu_custom_call.1} parent=31 // pred_fallthru
          _
        %s250 = sand.u32 %s93, 1
        %s251 = scalar_lea.sflag [#allocation7], %s250
        %s252 = sand.u32 %s93, 1
        %s253 = smul.addr %s252, 4
        %s254 = scalar_lea.vmem [#allocation6], %s253
        // Predicated region
        $region37: #{tpu_custom_call.1} parent=31 // pred_check
          %p255 = pneg %p106
        $region38: #{tpu_custom_call.1} parent=31 // pred_check_branch
          %257 = sbr.rel (%p255) target = $region40
        $region39: #{tpu_custom_call.1} parent=31 // pred_region
          %258 = dma.done %s251, 64
        $region40: #{tpu_custom_call.1} parent=31 // pred_fallthru
          _
        // Predicated region
        $region41: #{tpu_custom_call.1} parent=31 // pred_check
          %p259 = pneg %p127
        $region42: #{tpu_custom_call.1} parent=31 // pred_check_branch
          %261 = sbr.rel (%p259) target = $region44
        $region43: #{tpu_custom_call.1} parent=31 // pred_region
          %262 = dma.done [#allocation5], 16
        $region44: #{tpu_custom_call.1} parent=31 // pred_fallthru
          _
        %263 = sfence
        %s264 = sand.u32 %s59, 1
        %s265 = scalar_lea.sflag [#allocation3], %s264
        %s266 = sand.u32 %s59, 1
        %s267 = smul.addr %s266, 16
        %s268 = scalar_lea.vmem [#allocation2], %s267
        %p269 = pneg %p72
        %p270 = pneg %p69
        %s271 = sand.u32 %s93, 1
        %s272 = scalar_lea.sflag [#allocation7], %s271
        %s273 = sand.u32 %s93, 1
        %s274 = smul.addr %s273, 4
        %s275 = scalar_lea.vmem [#allocation6], %s274
        %p276 = pneg %p106
        %p277 = pneg %p103
        %p278 = pneg %p127
        %p279 = pneg %p124
        %p280 = pneg %p157
        %p281 = pneg %p154
        %s282 = sand.u32 %s144, 1
        %s283 = scalar_lea.sflag [#allocation4], %s282
        %s284 = sand.u32 %s144, 1
        %s285 = smul.addr %s284, 40
        %s286 = scalar_lea.vmem [#allocation9], %s285
        %s287 = sadd.s32 %s29, %s31
        %p288 = scmp.lt.s32.totalorder %s287, 0
        %s289 = scalar_select %p288, %s287, 0
        %s290 = sadd.s32 %s29, %s31
        %p291 = scmp.lt.s32.totalorder %s290, 0
        %s292 = scalar_select %p291, %s290, 0
        %s293 = smul.u32 %s29, 2
        %s294 = sadd.s32 %s293, %s30
        %p295 = scmp.eq.s32.totalorder %s31, 0
        // Predicated region
        $region45: #{tpu_custom_call.1} parent=31 // pred_check
          %p296 = pneg %p295
        $region46: #{tpu_custom_call.1} parent=31 // pred_check_branch
          %298 = sbr.rel (%p296) target = $region48
        $region47: #{tpu_custom_call.1} parent=31 // pred_region
          %299 = vst [vmem:[%s286] sm:$0xff] 0.0
          %300 = vst [vmem:[%s286 + $0x8] sm:$0xff] 0.0
          %301 = vst [vmem:[%s286 + $0x10] sm:$0xff] 0.0
          %302 = vst [vmem:[%s286 + $0x18] sm:$0xff] 0.0
          %303 = vst [vmem:[%s286 + $0x20] sm:$0xff] 0.0
        $region48: #{tpu_custom_call.1} parent=31 // pred_fallthru
          _
        %v304 = vld [vmem:[%s254] sm:$0xf]
        %v305 = vld [vmem:[%s245] sm:$0xf]
        %s306 = scalar_lea.vmem %s245, 4 [#allocation2]
        %v307 = vld [vmem:[%s306] sm:$0xf]
        %s308 = scalar_lea.vmem %s245, 8 [#allocation2]
        %v309 = vld [vmem:[%s308] sm:$0xf]
        %s310 = scalar_lea.vmem %s245, 12 [#allocation2]
        %v311 = vld [vmem:[%s310] sm:$0xf]
        %v312 = vmax.f32 %v305, %v307
        %v313 = vmax.f32 %v312, %v309
        %v314 = vmax.f32 %v313, %v311
        %v315 = vsub.f32 %v305, %v314
        %v316 = vmul.f32 %v315, 1.442695
        %v317 = vpow.pop %v316
        %s318 = sld [smem:[#allocation8]]
        %v319 = vstv %s318
        %v320 = vsub.f32 %v307, %v314
        %v321 = vmul.f32 %v320, 1.442695
        %v322 = vpow.pop %v321
        %v323 = vadd.f32 %v317, %v322
        %vm324 = vcmp.eq.s32.totalorder %v304, 1
        %v325 = vsel %vm324, %v307, %v305
        %v326 = vsel %vm324, %v322, %v317
        %s327 = sld [smem:[#allocation8 + $0x1]]
        %v328 = vstv %s327
        %v329 = vsel %vm324, %v328, %v319
        %v330 = vsub.f32 %v309, %v314
        %v331 = vmul.f32 %v330, 1.442695
        %v332 = vpow.pop %v331
        %v333 = vadd.f32 %v323, %v332
        %vm334 = vcmp.eq.s32.totalorder %v304, 2
        %v335 = vsel %vm334, %v309, %v325
        %v336 = vsel %vm334, %v332, %v326
        %s337 = sld [smem:[#allocation8 + $0x2]]
        %v338 = vstv %s337
        %v339 = vsel %vm334, %v338, %v329
        %v340 = vsub.f32 %v311, %v314
        %v341 = vmul.f32 %v340, 1.442695
        %v342 = vpow.pop %v341
        %v343 = vadd.f32 %v333, %v342
        %vm344 = vcmp.eq.s32.totalorder %v304, 3
        %v345 = vsel %vm344, %v311, %v335
        %v346 = vsel %vm344, %v342, %v336
        %s347 = sld [smem:[#allocation8 + $0x3]]
        %v348 = vstv %s347
        %v349 = vsel %vm344, %v348, %v339
        %v350 = vrcp.pop %v343
        %v351 = vmul.f32 1.0, %v350
        %v352 = vmul.f32 %v346, %v351
        %v353 = vmul.f32 %v317, %v351
        %v354 = vlog2.pop %v343
        %v355 = vmul.f32 %v354, 0.6931472
        %v356 = vsub.f32 %v314, %v345
        %v357 = vadd.f32 %v355, %v356
        %vm358 = vcmp.ne.s32.totalorder %v304, 0
        %v359 = vsel %vm358, 1, 0
        %v360 = vcvt.s32.f32 %v359
        %v361 = vsub.f32 1.0, %v353
        %v362 = vmul.f32 %v352, %v360
        %v363 = vmul.f32 %v349, %v357
        %v364 = vld [vmem:[%s286] sm:$0x1]
        %vm365 = vcmask 1043456
        %v366 = vsel %vm365, %v362, 0.0
        %v367 = vrot.slane %v366, 4
        %v368 = vadd.f32 %v366, %v367
        %v369 = vrot.slane %v368, 2
        %v370 = vadd.f32 %v368, %v369
        %v371 = vrot.slane %v370, 1
        %v372 = vadd.f32 %v370, %v371
        %v373 = vadd.f32 %v364, %v372
        %374 = vst [vmem:[%s286] sm:$0x1] %v373
        %v375 = vld [vmem:[%s286 + $0x8] sm:$0x1]
        %v376 = vsel %vm365, %v361, 0.0
        %v377 = vrot.slane %v376, 4
        %v378 = vadd.f32 %v376, %v377
        %v379 = vrot.slane %v378, 2
        %v380 = vadd.f32 %v378, %v379
        %v381 = vrot.slane %v380, 1
        %v382 = vadd.f32 %v380, %v381
        %v383 = vadd.f32 %v375, %v382
        %384 = vst [vmem:[%s286 + $0x8] sm:$0x1] %v383
        %v385 = vld [vmem:[%s286 + $0x10] sm:$0x1]
        %v386 = vsel %vm365, %v360, 0.0
        %v387 = vrot.slane %v386, 4
        %v388 = vadd.f32 %v386, %v387
        %v389 = vrot.slane %v388, 2
        %v390 = vadd.f32 %v388, %v389
        %v391 = vrot.slane %v390, 1
        %v392 = vadd.f32 %v390, %v391
        %v393 = vadd.f32 %v385, %v392
        %394 = vst [vmem:[%s286 + $0x10] sm:$0x1] %v393
        %v395 = vld [vmem:[%s286 + $0x18] sm:$0x1]
        %v396 = vsel %vm365, %v363, 0.0
        %v397 = vrot.slane %v396, 4
        %v398 = vadd.f32 %v396, %v397
        %v399 = vrot.slane %v398, 2
        %v400 = vadd.f32 %v398, %v399
        %v401 = vrot.slane %v400, 1
        %v402 = vadd.f32 %v400, %v401
        %v403 = vadd.f32 %v395, %v402
        %404 = vst [vmem:[%s286 + $0x18] sm:$0x1] %v403
        %v405 = vld [vmem:[%s286 + $0x20] sm:$0x1]
        %v406 = vsel %vm365, %v349, 0.0
        %v407 = vrot.slane %v406, 4
        %v408 = vadd.f32 %v406, %v407
        %v409 = vrot.slane %v408, 2
        %v410 = vadd.f32 %v408, %v409
        %v411 = vrot.slane %v410, 1
        %v412 = vadd.f32 %v410, %v411
        %v413 = vadd.f32 %v405, %v412
        %414 = vst [vmem:[%s286 + $0x20] sm:$0x1] %v413
        %s415 = sand.u32 %s144, 1
        %s416 = scalar_lea.sflag [#allocation4], %s415
        %s417 = sand.u32 %s144, 1
        %s418 = smul.addr %s417, 40
        %s419 = scalar_lea.vmem [#allocation9], %s418
        // Predicated region
        $region49: #{tpu_custom_call.1} parent=31 // pred_check
          %p420 = pneg %p154
        $region50: #{tpu_custom_call.1} parent=31 // pred_check_branch
          %422 = sbr.rel (%p420) target = $region52
        $region51: #{tpu_custom_call.1} parent=31 // pred_region
          %s423 = smul.u32 %s29, 2
          %s424 = sadd.s32 %s423, %s30
          %s426 = ssub.s32 640, 640
          %427 = vsyncadd %s416, %s426
          %s428 = smul.addr %s424, 5
          %s429 = smul.addr %s428, 128
          %s430 = scalar_lea.hbm %s3, %s429
          %s431 = sshll.u32 %s419, 4
          %s432 = int_to_ptr.vmem [resolvable:$true] %s431
          %437 = dma.vmem_to_hbm [thread:$0]  %s432, 640, %s430, %s416, 128, 128, 8
        $region52: #{tpu_custom_call.1} parent=31 // pred_fallthru
          _
      $region32: #{tpu_custom_call.1} parent=5 // pred_fallthru
        _
      %p438 = scmp.le.s32.totalorder 2, %s19
      // Predicated region
      $region53: #{tpu_custom_call.1} parent=5 // pred_check
        %p439 = pneg %p438
      $region54: #{tpu_custom_call.1} parent=5 // pred_check_branch
        %441 = sbr.rel (%p439) target = $region56
      $region55: #{tpu_custom_call.1} parent=5 // pred_region
        %s442 = ssub.s32 %s19, 2
        // Predicated region
        $region57: #{tpu_custom_call.1} parent=55 // pred_check
          %p443 = pneg %p160
        $region58: #{tpu_custom_call.1} parent=55 // pred_check_branch
          %445 = sbr.rel (%p443) target = $region60
        $region59: #{tpu_custom_call.1} parent=55 // pred_region
          %s446 = sand.u32 %s145, 1
          %s447 = scalar_lea.sflag [#allocation4], %s446
          %s448 = sand.u32 %s145, 1
          %s449 = smul.addr %s448, 40
          %s450 = scalar_lea.vmem [#allocation9], %s449
          %451 = dma.done %s447, 640
        $region60: #{tpu_custom_call.1} parent=55 // pred_fallthru
          _
      $region56: #{tpu_custom_call.1} parent=5 // pred_fallthru
        _
    $region6: #{tpu_custom_call.1} parent=1 // loop_footer
      %s23 = sadd.s32 1, %s19
    $region7: #{tpu_custom_call.1} parent=1 // loop_footer_branch
      %18 = sbr.rel target = $region3
    $region8: #{tpu_custom_call.1} parent=1 // loop_exit
      _
    %452 = vsyncpa [#allocation3], 1
    %s453 = scalar_lea.sflag [#allocation3], 1
    %454 = vsyncpa %s453, 1
    %455 = vsyncpa [#allocation7], 1
    %s456 = scalar_lea.sflag [#allocation7], 1
    %457 = vsyncpa %s456, 1
    %458 = vsyncpa [#allocation4], 1
    %s459 = scalar_lea.sflag [#allocation4], 1
    %460 = vsyncpa %s459, 1
    %461 = vsyncpa [#allocation5], 1
    %s462 = scalar_lea.sflag [#allocation5], 1
    %463 = vsyncpa %s462, 1

</llo_original>
